<compile_context>
chip_gen: v6e
topology: v6e:2x2x1
jax: 0.10.0
libtpu: 0.0.40
codegen_flags: <defaults>
</compile_context>

<pallas_src>
import functools

import jax
import jax.numpy as jnp
from jax.experimental import pallas as pl
from jax.experimental.pallas import tpu as pltpu

_LANE = 128
# Explicit scoped-VMEM budget: tile sizes below keep the double-buffered working set well
# under v7x's 64 MiB physical VMEM (and far under v5e/v6e's 128 MiB).
_VMEM_LIMIT_BYTES = 64 * 1024 * 1024


def _round_up(x, m):
    return (x + m - 1) // m * m


def _pick_tile(extent, preferred=512):
    """Largest lane-aligned tile <= `preferred` that divides the padded extent."""
    for cand in (preferred, 256, 128):
        if cand <= extent and extent % cand == 0:
            return cand
    return extent


def _pad2(a, rows, cols, dtype=jnp.float32):
    out = jnp.zeros((rows, cols), dtype)
    return out.at[: a.shape[0], : a.shape[1]].set(a.astype(dtype))


# ---------------------------------------------------------------------------
# Kernel 1 (used twice): one SAGEConv('mean') layer, tiled (m, k) with k-reduction
# ---------------------------------------------------------------------------
def _sage_layer_kernel(a_ref, xk_ref, xm_ref, w_ref, b_ref, o_ref, agg_ref, *,
                       apply_relu, matmul_dtype):
    """agg (f32 scratch) accumulates (A @ X)[m] over the k grid axis; at the last k step the
    self + neighbor transforms run as a single MXU pass: [X[m] | agg] @ [W_self; W_neigh]."""
    k = pl.program_id(1)
    mm = matmul_dtype

    @pl.when(k == 0)
    def _init():
        agg_ref[...] = jnp.zeros_like(agg_ref)

    # Mean aggregation partial sum for this A-column tile (MXU, f32 accumulate).
    agg_ref[...] += jnp.dot(a_ref[...].astype(mm), xk_ref[...].astype(mm),
                            preferred_element_type=jnp.float32)

    @pl.when(k == pl.num_programs(1) - 1)
    def _finalize():
        xs = jnp.concatenate([xm_ref[...].astype(mm), agg_ref[...].astype(mm)], axis=1)
        h = jnp.dot(xs, w_ref[...].astype(mm),
                    preferred_element_type=jnp.float32) + b_ref[...]
        if apply_relu:
            h = jnp.maximum(h, 0.0)                     # ReLU in f32 (VPU)
        o_ref[...] = h.astype(o_ref.dtype)


def _sage_layer(a_p, x_p, w_stacked, b_p, *, apply_relu, out_dtype, matmul_dtype):
    n_pad = a_p.shape[0]
    fin_pad = x_p.shape[1]
    fout_pad = w_stacked.shape[1]
    tm = _pick_tile(n_pad)
    tk = _pick_tile(n_pad)
    grid = (n_pad // tm, n_pad // tk)

    flops = 2 * n_pad * n_pad * fin_pad + 2 * n_pad * (2 * fin_pad) * fout_pad
    bytes_accessed = (a_p.size * a_p.dtype.itemsize
                      + 2 * x_p.size * x_p.dtype.itemsize
                      + 4 * (w_stacked.size + b_p.size)
                      + n_pad * fout_pad * jnp.dtype(out_dtype).itemsize)

    kern = functools.partial(_sage_layer_kernel, apply_relu=apply_relu,
                             matmul_dtype=matmul_dtype)
    # Note: on v5e, raising the A-tile spec to pipeline_mode=pl.Buffered(3) can hide the
    # exposed A DMA at ~820 GB/s; default double-buffering is kept here.
    return pl.pallas_call(
        kern,
        out_shape=jax.ShapeDtypeStruct((n_pad, fout_pad), out_dtype),
        grid=grid,
        in_specs=[
            pl.BlockSpec((tm, tk), lambda m, k: (m, k)),             # A tile
            pl.BlockSpec((tk, fin_pad), lambda m, k: (k, 0)),        # X rows (aggregation)
            pl.BlockSpec((tm, fin_pad), lambda m, k: (m, 0)),        # X rows (self term)
            pl.BlockSpec((2 * fin_pad, fout_pad), lambda m, k: (0, 0)),
            pl.BlockSpec((1, fout_pad), lambda m, k: (0, 0)),
        ],
        out_specs=pl.BlockSpec((tm, fout_pad), lambda m, k: (m, 0)),
        scratch_shapes=[pltpu.VMEM((tm, fin_pad), jnp.float32)],
        compiler_params=pltpu.CompilerParams(
            dimension_semantics=("parallel", "arbitrary"),
            vmem_limit_bytes=_VMEM_LIMIT_BYTES),
        cost_estimate=pl.CostEstimate(flops=flops, transcendentals=0,
                                      bytes_accessed=bytes_accessed),
    )(a_p, x_p, x_p, w_stacked, b_p)


# ---------------------------------------------------------------------------
# Kernel 2: u_dot_v edge scores, tiled over edges ("parallel")
# ---------------------------------------------------------------------------
def _edge_score_kernel(src_ref, dst_ref, h_ref, o_ref, *, matmul_dtype):
    """One edge tile.  The (N_pad, te) one-hot gather operands are rebuilt in-kernel from the
    int32 edge-id rows with a broadcasted-iota compare -> zero O(N*E) HBM bytes."""
    mm = matmul_dtype
    n_pad = h_ref.shape[0]
    te = src_ref.shape[1]
    rows = jax.lax.broadcasted_iota(jnp.int32, (n_pad, te), 0)
    one_u = jnp.where(rows == src_ref[...], 1.0, 0.0).astype(mm)
    one_v = jnp.where(rows == dst_ref[...], 1.0, 0.0).astype(mm)
    h = h_ref[...].astype(mm)
    # Contract h2 on axis 0 directly (no materialized h2.T): gathered endpoint features (F, te).
    dn = (((0,), (0,)), ((), ()))
    hu = jax.lax.dot_general(h, one_u, dn, preferred_element_type=jnp.float32)
    hv = jax.lax.dot_general(h, one_v, dn, preferred_element_type=jnp.float32)
    # TODO(synk): for high average degree, replace the one-hot MXU gather with a true row
    # gather (scalar-prefetched edge ids + dynamic first-axis loads from VMEM-resident h2).
    o_ref[...] = jnp.sum(hu * hv, axis=0, keepdims=True)      # lane-dense (1, te) store


def _edge_scores(h2, src_row, dst_row, *, matmul_dtype):
    n_pad, fo_pad = h2.shape
    e_pad = src_row.shape[1]
    te = _pick_tile(e_pad)
    grid = (e_pad // te,)

    flops = 2 * (2 * n_pad * fo_pad * e_pad) + 2 * fo_pad * e_pad
    bytes_accessed = h2.size * h2.dtype.itemsize + 2 * e_pad * 4 + e_pad * 4

    kern = functools.partial(_edge_score_kernel, matmul_dtype=matmul_dtype)
    return pl.pallas_call(
        kern,
        out_shape=jax.ShapeDtypeStruct((1, e_pad), jnp.float32),
        grid=grid,
        in_specs=[
            pl.BlockSpec((1, te), lambda e: (0, e)),
            pl.BlockSpec((1, te), lambda e: (0, e)),
            pl.BlockSpec((n_pad, fo_pad), lambda e: (0, 0)),
        ],
        out_specs=pl.BlockSpec((1, te), lambda e: (0, e)),
        compiler_params=pltpu.CompilerParams(
            dimension_semantics=("parallel",),
            vmem_limit_bytes=_VMEM_LIMIT_BYTES),
        cost_estimate=pl.CostEstimate(flops=flops, transcendentals=0,
                                      bytes_accessed=bytes_accessed),
    )(src_row, dst_row, h2)


# ---------------------------------------------------------------------------
# Wrapper: pad to lane-aligned shapes, pack weights, chain the kernels
# ---------------------------------------------------------------------------
def model_forward(a_norm, edge_src, edge_dst, x, params, *, matmul_dtype=jnp.bfloat16):
    """Model.forward: SAGE(conv1 -> relu -> conv2) then DotProductPredictor (u_dot_v).

    matmul_dtype=jnp.bfloat16 (default) feeds bf16 MXU operands with f32 accumulation —
    the fast path on v5e/v6e/v7x.  Pass jnp.float32 for bit-accurate validation."""
    n, f_in = x.shape
    e = edge_src.shape[0]
    hid = params["w1_self"].shape[1]
    f_out = params["w2_self"].shape[1]

    n_pad = _round_up(n, _LANE)
    fi_pad = _round_up(f_in, _LANE)
    hid_pad = _round_up(hid, _LANE)
    fo_pad = _round_up(f_out, _LANE)
    e_pad = _round_up(e, _LANE)

    # A ships in the MXU dtype (halves its HBM bytes on the bf16 path).
    a_p = _pad2(a_norm, n_pad, n_pad, dtype=matmul_dtype)
    x_p = _pad2(x, n_pad, fi_pad)

    # Stacked [W_self; W_neigh] per layer -> one fused MXU pass inside the kernel.
    w1 = jnp.concatenate([_pad2(params["w1_self"], fi_pad, hid_pad),
                          _pad2(params["w1_neigh"], fi_pad, hid_pad)], axis=0)
    b1 = _pad2(params["b1"], 1, hid_pad)
    w2 = jnp.concatenate([_pad2(params["w2_self"], hid_pad, fo_pad),
                          _pad2(params["w2_neigh"], hid_pad, fo_pad)], axis=0)
    b2 = _pad2(params["b2"], 1, fo_pad)

    # Edge endpoints as tiny (1, E_pad) int32 rows (padded slots point at node 0; their
    # scores are sliced off below).  No O(N*E) arrays are built host-side.
    src_row = jnp.zeros((1, e_pad), jnp.int32).at[0, :e].set(edge_src.astype(jnp.int32))
    dst_row = jnp.zeros((1, e_pad), jnp.int32).at[0, :e].set(edge_dst.astype(jnp.int32))

    h1 = _sage_layer(a_p, x_p, w1, b1, apply_relu=True,
                     out_dtype=matmul_dtype, matmul_dtype=matmul_dtype)
    h2 = _sage_layer(a_p, h1, w2, b2, apply_relu=False,
                     out_dtype=jnp.float32, matmul_dtype=matmul_dtype)
    scores_row = _edge_scores(h2, src_row, dst_row, matmul_dtype=matmul_dtype)
    # Back to DGL u_dot_v layout: (E, 1).
    return scores_row[0, :e].reshape(e, 1)


# ---------------------------------------------------------------------------
# Pure-JAX reference (for correctness check)
# ---------------------------------------------------------------------------
def reference_forward(a_norm, edge_src, edge_dst, x, p):
    h = x @ p["w1_self"] + (a_norm @ x) @ p["w1_neigh"] + p["b1"]
    h = jnp.maximum(h, 0.0)
    h = h @ p["w2_self"] + (a_norm @ h) @ p["w2_neigh"] + p["b2"]
    return jnp.sum(h[edge_src] * h[edge_dst], axis=-1, keepdims=True)


if __name__ == "__main__":
    # Small deterministic problem: 16 nodes, bidirectional ring graph (32 edges).
    N = 16
    in_features, hidden_features, out_features = 8, 32, 16

    nodes = jnp.arange(N, dtype=jnp.int32)
    src_fwd, dst_fwd = nodes, (nodes + 1) % N
    edge_src = jnp.concatenate([src_fwd, dst_fwd])   # (E,) = (32,)
    edge_dst = jnp.concatenate([dst_fwd, src_fwd])

    # Dense normalized adjacency for mean aggregation: A_norm[v, u] = 1 / in_deg(v).
    adj = jnp.zeros((N, N), jnp.float32).at[edge_dst, edge_src].set(1.0)
    in_deg = jnp.clip(adj.sum(axis=1, keepdims=True), 1.0, None)
    a_norm = adj / in_deg

    # Deterministic parameter init (synthetic weights; SAGEConv has W_self, W_neigh, bias).
    key = jax.random.PRNGKey(0)
    k = jax.random.split(key, 7)
    params = {
        "w1_self": 0.1 * jax.random.normal(k[0], (in_features, hidden_features), jnp.float32),
        "w1_neigh": 0.1 * jax.random.normal(k[1], (in_features, hidden_features), jnp.float32),
        "b1": 0.1 * jax.random.normal(k[2], (1, hidden_features), jnp.float32),
        "w2_self": 0.1 * jax.random.normal(k[3], (hidden_features, out_features), jnp.float32),
        "w2_neigh": 0.1 * jax.random.normal(k[4], (hidden_features, out_features), jnp.float32),
        "b2": 0.1 * jax.random.normal(k[5], (1, out_features), jnp.float32),
    }
    x = jax.random.normal(k[6], (N, in_features), jnp.float32)

    ref = reference_forward(a_norm, edge_src, edge_dst, x, params)

    # f32 MXU path: strict validation against the f32 reference.
    score_f32 = jax.block_until_ready(
        model_forward(a_norm, edge_src, edge_dst, x, params, matmul_dtype=jnp.float32))
    assert score_f32.shape == (edge_src.shape[0], 1)
    assert jnp.allclose(score_f32, ref, atol=1e-4, rtol=1e-4)

    # Default bf16 MXU path (fast path on v5e/v6e/v7x): f32 accumulation, loose tolerance.
    score_bf16 = jax.block_until_ready(
        model_forward(a_norm, edge_src, edge_dst, x, params))
    assert score_bf16.shape == (edge_src.shape[0], 1)
    assert jnp.allclose(score_bf16, ref, atol=1e-1, rtol=1e-1)

    print("KERNEL_OK")
</pallas_src>

<mosaic_0001>
module attributes {stable_mosaic.version = 11 : i64} {
  func.func @_sage_layer_kernel(%arg0: i32, %arg1: i32, %arg2: memref<128x128xf32, #tpu.memory_space<vmem>>, %arg3: memref<128x128xf32, #tpu.memory_space<vmem>>, %arg4: memref<128x128xf32, #tpu.memory_space<vmem>>, %arg5: memref<256x128xf32, #tpu.memory_space<vmem>>, %arg6: memref<1x128xf32, #tpu.memory_space<vmem>>, %arg7: memref<128x128xf32, #tpu.memory_space<vmem>>, %arg8: memref<128x128xf32, #tpu.memory_space<vmem>>) attributes {dimension_semantics = [#tpu.dimension_semantics<parallel>, #tpu.dimension_semantics<arbitrary>], iteration_bounds = array<i64: 1, 1>, scalar_prefetch = 0 : i64, scratch_operands = 1 : i64, tpu.core_type = #tpu.core_type<tc>, window_params = [{transform_indices = @transform_0, window_bounds = array<i64: 128, 128>}, {transform_indices = @transform_1, window_bounds = array<i64: 128, 128>}, {transform_indices = @transform_2, window_bounds = array<i64: 128, 128>}, {pipeline_mode = #tpu.pipeline_mode<synchronous>, transform_indices = @transform_3, window_bounds = array<i64: 256, 128>}, {pipeline_mode = #tpu.pipeline_mode<synchronous>, transform_indices = @transform_4, window_bounds = array<i64: 1, 128>}, {transform_indices = @transform_5, window_bounds = array<i64: 128, 128>}]} {
    %c0_i32 = arith.constant 0 : i32
    %0 = arith.cmpi eq, %arg1, %c0_i32 : i32
    %1 = arith.extui %0 : i1 to i32
    %c0_i32_0 = arith.constant 0 : i32
    %2 = arith.cmpi ne, %1, %c0_i32_0 : i32
    scf.if %2 {
      %cst_10 = arith.constant 0.000000e+00 : f32
      %12 = vector.broadcast %cst_10 : f32 to vector<128x128xf32>
      %c0_11 = arith.constant 0 : index
      %c0_12 = arith.constant 0 : index
      %13 = vector.load %arg8[%c0_11, %c0_12] : memref<128x128xf32, #tpu.memory_space<vmem>>, vector<128x128xf32>
      tpu.vector_store %arg8[%c0_11, %c0_12], %12 {strides = array<i32>} : memref<128x128xf32, #tpu.memory_space<vmem>>, vector<128x128xf32>,
    } else {
    }
    %c0 = arith.constant 0 : index
    %c0_1 = arith.constant 0 : index
    %3 = vector.load %arg8[%c0, %c0_1] : memref<128x128xf32, #tpu.memory_space<vmem>>, vector<128x128xf32>
    %c0_2 = arith.constant 0 : index
    %c0_3 = arith.constant 0 : index
    %4 = vector.load %arg2[%c0_2, %c0_3] : memref<128x128xf32, #tpu.memory_space<vmem>>, vector<128x128xf32>
    %c0_4 = arith.constant 0 : index
    %c0_5 = arith.constant 0 : index
    %5 = vector.load %arg3[%c0_4, %c0_5] : memref<128x128xf32, #tpu.memory_space<vmem>>, vector<128x128xf32>
    %cst = arith.constant dense<0.000000e+00> : vector<128x128xf32>
    %6 = tpu.matmul %4, %5, %cst {dimension_numbers = #tpu.dot_dimension_numbers<[1], [0], [0], [1], [0, 0, 1, 1], [], []>} : vector<128x128xf32>, vector<128x128xf32>, vector<128x128xf32> -> vector<128x128xf32>
    %7 = arith.addf %3, %6 : vector<128x128xf32>
    %c0_6 = arith.constant 0 : index
    %c0_7 = arith.constant 0 : index
    %8 = vector.load %arg8[%c0_6, %c0_7] : memref<128x128xf32, #tpu.memory_space<vmem>>, vector<128x128xf32>
    tpu.vector_store %arg8[%c0_6, %c0_7], %7 {strides = array<i32>} : memref<128x128xf32, #tpu.memory_space<vmem>>, vector<128x128xf32>,
    %c0_i32_8 = arith.constant 0 : i32
    %9 = arith.cmpi eq, %arg1, %c0_i32_8 : i32
    %10 = arith.extui %9 : i1 to i32
    %c0_i32_9 = arith.constant 0 : i32
    %11 = arith.cmpi ne, %10, %c0_i32_9 : i32
    scf.if %11 {
      %c0_10 = arith.constant 0 : index
      %c0_11 = arith.constant 0 : index
      %12 = vector.load %arg4[%c0_10, %c0_11] : memref<128x128xf32, #tpu.memory_space<vmem>>, vector<128x128xf32>
      %c0_12 = arith.constant 0 : index
      %c0_13 = arith.constant 0 : index
      %13 = vector.load %arg8[%c0_12, %c0_13] : memref<128x128xf32, #tpu.memory_space<vmem>>, vector<128x128xf32>
      %14 = tpu.concatenate %12, %13 in 1 : vector<128x128xf32>, vector<128x128xf32> -> vector<128x256xf32>
      %c0_14 = arith.constant 0 : index
      %c0_15 = arith.constant 0 : index
      %15 = vector.load %arg5[%c0_14, %c0_15] : memref<256x128xf32, #tpu.memory_space<vmem>>, vector<256x128xf32>
      %cst_16 = arith.constant dense<0.000000e+00> : vector<128x128xf32>
      %16 = tpu.matmul %14, %15, %cst_16 {dimension_numbers = #tpu.dot_dimension_numbers<[1], [0], [0], [1], [0, 0, 1, 1], [], []>} : vector<128x256xf32>, vector<256x128xf32>, vector<128x128xf32> -> vector<128x128xf32>
      %c0_17 = arith.constant 0 : index
      %c0_18 = arith.constant 0 : index
      %17 = vector.load %arg6[%c0_17, %c0_18] : memref<1x128xf32, #tpu.memory_space<vmem>>, vector<1x128xf32>
      %18 = vector.broadcast %17 : vector<1x128xf32> to vector<128x128xf32>
      %19 = arith.addf %16, %18 : vector<128x128xf32>
      %cst_19 = arith.constant 0.000000e+00 : f32
      %20 = vector.broadcast %cst_19 : f32 to vector<128x128xf32>
      %21 = arith.maximumf %19, %20 : vector<128x128xf32>
      %c0_20 = arith.constant 0 : index
      %c0_21 = arith.constant 0 : index
      %22 = vector.load %arg7[%c0_20, %c0_21] : memref<128x128xf32, #tpu.memory_space<vmem>>, vector<128x128xf32>
      tpu.vector_store %arg7[%c0_20, %c0_21], %21 {strides = array<i32>} : memref<128x128xf32, #tpu.memory_space<vmem>>, vector<128x128xf32>,
    } else {
    }
    return
  }
  func.func @transform_0(%arg0: i32, %arg1: i32) -> (i32, i32) {
    %c0_i32 = arith.constant 0 : i32
    return %arg0, %arg1 : i32, i32
  }
  func.func @transform_1(%arg0: i32, %arg1: i32) -> (i32, i32) {
    %c0_i32 = arith.constant 0 : i32
    %c0_i32_0 = arith.constant 0 : i32
    return %arg1, %c0_i32 : i32, i32
  }
  func.func @transform_2(%arg0: i32, %arg1: i32) -> (i32, i32) {
    %c0_i32 = arith.constant 0 : i32
    %c0_i32_0 = arith.constant 0 : i32
    return %arg0, %c0_i32 : i32, i32
  }
  func.func @transform_3(%arg0: i32, %arg1: i32) -> (i32, i32) {
    %c0_i32 = arith.constant 0 : i32
    %c0_i32_0 = arith.constant 0 : i32
    %c0_i32_1 = arith.constant 0 : i32
    return %c0_i32, %c0_i32_0 : i32, i32
  }
  func.func @transform_4(%arg0: i32, %arg1: i32) -> (i32, i32) {
    %c0_i32 = arith.constant 0 : i32
    %c0_i32_0 = arith.constant 0 : i32
    %c0_i32_1 = arith.constant 0 : i32
    return %c0_i32, %c0_i32_0 : i32, i32
  }
  func.func @transform_5(%arg0: i32, %arg1: i32) -> (i32, i32) {
    %c0_i32 = arith.constant 0 : i32
    %c0_i32_0 = arith.constant 0 : i32
    return %arg0, %c0_i32 : i32, i32
  }
}

</mosaic_0001>

<llo_original>
// kernel: tpu_custom_call.1
$region0: #{tpu_custom_call.1}
  #allocation0 [shape = 'u32[]', space=smem, size = 0x4, offset = 0x4, fixed_abs, tag = 'smem constant byte address 0x4 - core index']
  #allocation1 [shape = 'u32[144,128]{1,0:T(1,128)}', space=vmem, size = 0x12000, scoped, tag = 'internal scratch']
  #allocation2 [shape = 'f32[128,128]{1,0:T(8,128)}', space=vmem, size = 0x10000, scoped, tag = 'scratch operand']
  %s0 = inlined_call_operand.hbm [shape: f32[128,128], index: 0, kind: input, shape index: {}]
  %s1 = inlined_call_operand.hbm [shape: f32[128,128], index: 1, kind: input, shape index: {}]
  %s2 = inlined_call_operand.hbm [shape: f32[128,128], index: 2, kind: input, shape index: {}]
  %s3 = inlined_call_operand.hbm [shape: f32[256,128], index: 3, kind: input, shape index: {}]
  %s4 = inlined_call_operand.vmem [shape: f32[1,128], index: 4, kind: input, shape index: {}]
  %s5 = inlined_call_operand.hbm [shape: f32[128,128], index: 5, kind: output, shape index: {}]
  %s6 = sld [smem:[#allocation0]]
  $region54: #{tpu_custom_call.1} parent=0
    _
  %s8 = ssub.s32 1, %s6
  %s9 = scalar_select 0, %s8, %s6
  $region1: #{tpu_custom_call.1} parent=0
    #allocation3 [shape = 'u8[65536]{0}', space=vmem, size = 0x10000, scoped, tag = 'input window, operand 0, single buffered']
    #allocation4 [shape = 's32[1]{0}', space=sflag, size = 0x4, scoped, tag = 'scoped memory for tpu_custom_call.1']
    #allocation5 [shape = 's32[1]{0}', space=sflag, size = 0x4, scoped, tag = 'scoped memory for tpu_custom_call.1']
    #allocation6 [shape = 'u8[65536]{0}', space=vmem, size = 0x10000, scoped, tag = 'input window, operand 1, single buffered']
    #allocation7 [shape = 's32[1]{0}', space=sflag, size = 0x4, scoped, tag = 'scoped memory for tpu_custom_call.1']
    #allocation8 [shape = 'u8[65536]{0}', space=vmem, size = 0x10000, scoped, tag = 'input window, operand 2, single buffered']
    #allocation9 [shape = 'u8[131072]{0}', space=vmem, size = 0x20000, scoped, tag = 'input window, operand 3, single buffered']
    #allocation10 [shape = 's32[1]{0}', space=sflag, size = 0x4, scoped, tag = 'scoped memory for tpu_custom_call.1']
    #allocation11 [shape = 'u8[65536]{0}', space=vmem, size = 0x10000, scoped, tag = 'output window, operand 0, single buffered']
    %10 = vsyncpa [#allocation4], 0
    %11 = vsyncpa [#allocation7], 0
    %12 = vsyncpa [#allocation10], 0
    %13 = vsyncpa [#allocation5], 0
    // Predicated region
    $region2: #{tpu_custom_call.1} parent=1 // pred_check
      _
    $region3: #{tpu_custom_call.1} parent=1 // pred_check_branch
      %15 = sbr.rel (0) target = $region5
    $region4: #{tpu_custom_call.1} parent=1 // pred_region
      %s17 = ssub.s32 2048, 2048
      %18 = vsyncadd [#allocation4], %s17
      %s19 = sshll.u32 [#allocation3], 4
      %s20 = int_to_ptr.vmem [resolvable:$true] %s19
      %25 = dma.hbm_to_vmem [thread:$0]  %s0, 2048, %s20, [#allocation4], 128, 128, 8
    $region5: #{tpu_custom_call.1} parent=1 // pred_fallthru
      _
    // Predicated region
    $region6: #{tpu_custom_call.1} parent=1 // pred_check
      _
    $region7: #{tpu_custom_call.1} parent=1 // pred_check_branch
      %27 = sbr.rel (0) target = $region9
    $region8: #{tpu_custom_call.1} parent=1 // pred_region
      %s29 = ssub.s32 2048, 2048
      %30 = vsyncadd [#allocation7], %s29
      %s31 = sshll.u32 [#allocation6], 4
      %s32 = int_to_ptr.vmem [resolvable:$true] %s31
      %37 = dma.hbm_to_vmem [thread:$0]  %s1, 2048, %s32, [#allocation7], 128, 128, 8
    $region9: #{tpu_custom_call.1} parent=1 // pred_fallthru
      _
    // Predicated region
    $region10: #{tpu_custom_call.1} parent=1 // pred_check
      _
    $region11: #{tpu_custom_call.1} parent=1 // pred_check_branch
      %39 = sbr.rel (0) target = $region13
    $region12: #{tpu_custom_call.1} parent=1 // pred_region
      %s41 = ssub.s32 2048, 2048
      %42 = vsyncadd [#allocation7], %s41
      %s43 = sshll.u32 [#allocation8], 4
      %s44 = int_to_ptr.vmem [resolvable:$true] %s43
      %49 = dma.hbm_to_vmem [thread:$0]  %s2, 2048, %s44, [#allocation7], 128, 128, 8
    $region13: #{tpu_custom_call.1} parent=1 // pred_fallthru
      _
    // Predicated region
    $region14: #{tpu_custom_call.1} parent=1 // pred_check
      _
    $region15: #{tpu_custom_call.1} parent=1 // pred_check_branch
      %51 = sbr.rel (0) target = $region17
    $region16: #{tpu_custom_call.1} parent=1 // pred_region
      %s53 = ssub.s32 4096, 4096
      %54 = vsyncadd [#allocation10], %s53
      %s55 = sshll.u32 [#allocation9], 4
      %s56 = int_to_ptr.vmem [resolvable:$true] %s55
      %61 = dma.hbm_to_vmem [thread:$0]  %s3, 4096, %s56, [#allocation10], 128, 128, 8
    $region17: #{tpu_custom_call.1} parent=1 // pred_fallthru
      _
    // Predicated region
    $region18: #{tpu_custom_call.1} parent=1 // pred_check
      _
    $region19: #{tpu_custom_call.1} parent=1 // pred_check_branch
      %63 = sbr.rel (0) target = $region21
    $region20: #{tpu_custom_call.1} parent=1 // pred_region
      _
    $region21: #{tpu_custom_call.1} parent=1 // pred_fallthru
      _
    // Predicated region
    $region22: #{tpu_custom_call.1} parent=1 // pred_check
      _
    $region23: #{tpu_custom_call.1} parent=1 // pred_check_branch
      %65 = sbr.rel (0) target = $region25
    $region24: #{tpu_custom_call.1} parent=1 // pred_region
      %66 = dma.done [#allocation4], 2048
    $region25: #{tpu_custom_call.1} parent=1 // pred_fallthru
      _
    // Predicated region
    $region26: #{tpu_custom_call.1} parent=1 // pred_check
      _
    $region27: #{tpu_custom_call.1} parent=1 // pred_check_branch
      %68 = sbr.rel (0) target = $region29
    $region28: #{tpu_custom_call.1} parent=1 // pred_region
      %69 = dma.done [#allocation7], 2048
    $region29: #{tpu_custom_call.1} parent=1 // pred_fallthru
      _
    // Predicated region
    $region30: #{tpu_custom_call.1} parent=1 // pred_check
      _
    $region31: #{tpu_custom_call.1} parent=1 // pred_check_branch
      %71 = sbr.rel (0) target = $region33
    $region32: #{tpu_custom_call.1} parent=1 // pred_region
      %72 = dma.done [#allocation7], 2048
    $region33: #{tpu_custom_call.1} parent=1 // pred_fallthru
      _
    // Predicated region
    $region34: #{tpu_custom_call.1} parent=1 // pred_check
      _
    $region35: #{tpu_custom_call.1} parent=1 // pred_check_branch
      %74 = sbr.rel (0) target = $region37
    $region36: #{tpu_custom_call.1} parent=1 // pred_region
      %75 = dma.done [#allocation10], 4096
    $region37: #{tpu_custom_call.1} parent=1 // pred_fallthru
      _
    %p76 = scmp.eq.s32.totalorder 0, 0
    // Predicated region
    $region38: #{tpu_custom_call.1} parent=1 // pred_check
      %p77 = pneg %p76
    $region39: #{tpu_custom_call.1} parent=1 // pred_check_branch
      %79 = sbr.rel (%p77) target = $region41
    $region40: #{tpu_custom_call.1} parent=1 // pred_region
      %80 = vst [vmem:[#allocation2] sm:$0xff] 0.0
      %81 = vst [vmem:[#allocation2 + $0x8] sm:$0xff] 0.0
      %82 = vst [vmem:[#allocation2 + $0x10] sm:$0xff] 0.0
      %83 = vst [vmem:[#allocation2 + $0x18] sm:$0xff] 0.0
      %84 = vst [vmem:[#allocation2 + $0x20] sm:$0xff] 0.0
      %85 = vst [vmem:[#allocation2 + $0x28] sm:$0xff] 0.0
      %86 = vst [vmem:[#allocation2 + $0x30] sm:$0xff] 0.0
      %87 = vst [vmem:[#allocation2 + $0x38] sm:$0xff] 0.0
      %88 = vst [vmem:[#allocation2 + $0x40] sm:$0xff] 0.0
      %89 = vst [vmem:[#allocation2 + $0x48] sm:$0xff] 0.0
      %90 = vst [vmem:[#allocation2 + $0x50] sm:$0xff] 0.0
      %91 = vst [vmem:[#allocation2 + $0x58] sm:$0xff] 0.0
      %92 = vst [vmem:[#allocation2 + $0x60] sm:$0xff] 0.0
      %93 = vst [vmem:[#allocation2 + $0x68] sm:$0xff] 0.0
      %94 = vst [vmem:[#allocation2 + $0x70] sm:$0xff] 0.0
      %95 = vst [vmem:[#allocation2 + $0x78] sm:$0xff] 0.0
    $region41: #{tpu_custom_call.1} parent=1 // pred_fallthru
      _
    %v96 = vld [vmem:[#allocation2] sm:$0xff]
    %v97 = vld [vmem:[#allocation2 + $0x8] sm:$0xff]
    %v98 = vld [vmem:[#allocation2 + $0x10] sm:$0xff]
    %v99 = vld [vmem:[#allocation2 + $0x18] sm:$0xff]
    %v100 = vld [vmem:[#allocation2 + $0x20] sm:$0xff]
    %v101 = vld [vmem:[#allocation2 + $0x28] sm:$0xff]
    %v102 = vld [vmem:[#allocation2 + $0x30] sm:$0xff]
    %v103 = vld [vmem:[#allocation2 + $0x38] sm:$0xff]
    %v104 = vld [vmem:[#allocation2 + $0x40] sm:$0xff]
    %v105 = vld [vmem:[#allocation2 + $0x48] sm:$0xff]
    %v106 = vld [vmem:[#allocation2 + $0x50] sm:$0xff]
    %v107 = vld [vmem:[#allocation2 + $0x58] sm:$0xff]
    %v108 = vld [vmem:[#allocation2 + $0x60] sm:$0xff]
    %v109 = vld [vmem:[#allocation2 + $0x68] sm:$0xff]
    %v110 = vld [vmem:[#allocation2 + $0x70] sm:$0xff]
    %v111 = vld [vmem:[#allocation2 + $0x78] sm:$0xff]
    %v112 = vld [vmem:[#allocation3] sm:$0xff]
    %v113 = vld [vmem:[#allocation3 + $0x8] sm:$0xff]
    %v114 = vld [vmem:[#allocation3 + $0x10] sm:$0xff]
    %v115 = vld [vmem:[#allocation3 + $0x18] sm:$0xff]
    %v116 = vld [vmem:[#allocation3 + $0x20] sm:$0xff]
    %v117 = vld [vmem:[#allocation3 + $0x28] sm:$0xff]
    %v118 = vld [vmem:[#allocation3 + $0x30] sm:$0xff]
    %v119 = vld [vmem:[#allocation3 + $0x38] sm:$0xff]
    %v120 = vld [vmem:[#allocation3 + $0x40] sm:$0xff]
    %v121 = vld [vmem:[#allocation3 + $0x48] sm:$0xff]
    %v122 = vld [vmem:[#allocation3 + $0x50] sm:$0xff]
    %v123 = vld [vmem:[#allocation3 + $0x58] sm:$0xff]
    %v124 = vld [vmem:[#allocation3 + $0x60] sm:$0xff]
    %v125 = vld [vmem:[#allocation3 + $0x68] sm:$0xff]
    %v126 = vld [vmem:[#allocation3 + $0x70] sm:$0xff]
    %v127 = vld [vmem:[#allocation3 + $0x78] sm:$0xff]
    %v128 = vld [vmem:[#allocation6] sm:$0xff]
    %v129 = vld [vmem:[#allocation6 + $0x8] sm:$0xff]
    %v130 = vld [vmem:[#allocation6 + $0x10] sm:$0xff]
    %v131 = vld [vmem:[#allocation6 + $0x18] sm:$0xff]
    %v132 = vld [vmem:[#allocation6 + $0x20] sm:$0xff]
    %v133 = vld [vmem:[#allocation6 + $0x28] sm:$0xff]
    %v134 = vld [vmem:[#allocation6 + $0x30] sm:$0xff]
    %v135 = vld [vmem:[#allocation6 + $0x38] sm:$0xff]
    %v136 = vld [vmem:[#allocation6 + $0x40] sm:$0xff]
    %v137 = vld [vmem:[#allocation6 + $0x48] sm:$0xff]
    %v138 = vld [vmem:[#allocation6 + $0x50] sm:$0xff]
    %v139 = vld [vmem:[#allocation6 + $0x58] sm:$0xff]
    %v140 = vld [vmem:[#allocation6 + $0x60] sm:$0xff]
    %v141 = vld [vmem:[#allocation6 + $0x68] sm:$0xff]
    %v142 = vld [vmem:[#allocation6 + $0x70] sm:$0xff]
    %v143 = vld [vmem:[#allocation6 + $0x78] sm:$0xff]
    %144 = vmatprep.subr.mxu0 0.0
    %145 = vmatpush1.msra.mxu0 %v143
    %146 = vmatprep.subr.mxu0 0.0
    %147 = vmatpush1.msra.mxu0 %v142
    %148 = vmatprep.subr.mxu0 0.0
    %149 = vmatpush1.msra.mxu0 %v141
    %150 = vmatprep.subr.mxu0 0.0
    %151 = vmatpush1.msra.mxu0 %v140
    %152 = vmatprep.subr.mxu0 0.0
    %153 = vmatpush1.msra.mxu0 %v139
    %154 = vmatprep.subr.mxu0 0.0
    %155 = vmatpush1.msra.mxu0 %v138
    %156 = vmatprep.subr.mxu0 0.0
    %157 = vmatpush1.msra.mxu0 %v137
    %158 = vmatprep.subr.mxu0 0.0
    %159 = vmatpush1.msra.mxu0 %v136
    %160 = vmatprep.subr.mxu0 0.0
    %161 = vmatpush1.msra.mxu0 %v135
    %162 = vmatprep.subr.mxu0 0.0
    %163 = vmatpush1.msra.mxu0 %v134
    %164 = vmatprep.subr.mxu0 0.0
    %165 = vmatpush1.msra.mxu0 %v133
    %166 = vmatprep.subr.mxu0 0.0
    %167 = vmatpush1.msra.mxu0 %v132
    %168 = vmatprep.subr.mxu0 0.0
    %169 = vmatpush1.msra.mxu0 %v131
    %170 = vmatprep.subr.mxu0 0.0
    %171 = vmatpush1.msra.mxu0 %v130
    %172 = vmatprep.subr.mxu0 0.0
    %173 = vmatpush1.msra.mxu0 %v129
    %174 = vmatprep.subr.mxu0 0.0
    %175 = vmatpush1.msra.mxu0 %v128
    %176 = vmatprep.subr.mxu0 0.0
    %177 = vmatpush2.msra.mxu0 0.0
    %178 = vmatprep.subr.mxu0 0.0
    %179 = vmatpush2.msra.mxu0 0.0
    %180 = vmatprep.subr.mxu0 0.0
    %181 = vmatpush2.msra.mxu0 0.0
    %182 = vmatprep.subr.mxu0 0.0
    %183 = vmatpush2.msra.mxu0 0.0
    %184 = vmatprep.subr.mxu0 0.0
    %185 = vmatpush2.msra.mxu0 0.0
    %186 = vmatprep.subr.mxu0 0.0
    %187 = vmatpush2.msra.mxu0 0.0
    %188 = vmatprep.subr.mxu0 0.0
    %189 = vmatpush2.msra.mxu0 0.0
    %190 = vmatprep.subr.mxu0 0.0
    %191 = vmatpush2.msra.mxu0 0.0
    %192 = vmatprep.subr.mxu0 0.0
    %193 = vmatpush2.msra.mxu0 0.0
    %194 = vmatprep.subr.mxu0 0.0
    %195 = vmatpush2.msra.mxu0 0.0
    %196 = vmatprep.subr.mxu0 0.0
    %197 = vmatpush2.msra.mxu0 0.0
    %198 = vmatprep.subr.mxu0 0.0
    %199 = vmatpush2.msra.mxu0 0.0
    %200 = vmatprep.subr.mxu0 0.0
    %201 = vmatpush2.msra.mxu0 0.0
    %202 = vmatprep.subr.mxu0 0.0
    %203 = vmatpush2.msra.mxu0 0.0
    %204 = vmatprep.subr.mxu0 0.0
    %205 = vmatpush2.msra.mxu0 0.0
    %206 = vmatprep.subr.mxu0 0.0
    %207 = vmatpush2.msra.mxu0 0.0
    %208 = vmatprep.mubr.f32.mxu0 0.0
    %209 = vmatmul.mubr.f32.gmra.mxu0 %v112
    %v210 = vpop.f32.mrf.mxu0
    %v211 = vadd.f32 0.0, %v210
    %v212 = vpop.f32.mrf.mxu0
    %213 = vmatprep.mubr.f32.mxu0 0.0
    %214 = vmatmul.mubr.f32.gmra.mxu0 %v113
    %v215 = vpop.f32.mrf.mxu0
    %v216 = vadd.f32 0.0, %v215
    %v217 = vpop.f32.mrf.mxu0
    %218 = vmatprep.mubr.f32.mxu0 0.0
    %219 = vmatmul.mubr.f32.gmra.mxu0 %v114
    %v220 = vpop.f32.mrf.mxu0
    %v221 = vadd.f32 0.0, %v220
    %v222 = vpop.f32.mrf.mxu0
    %223 = vmatprep.mubr.f32.mxu0 0.0
    %224 = vmatmul.mubr.f32.gmra.mxu0 %v115
    %v225 = vpop.f32.mrf.mxu0
    %v226 = vadd.f32 0.0, %v225
    %v227 = vpop.f32.mrf.mxu0
    %228 = vmatprep.mubr.f32.mxu0 0.0
    %229 = vmatmul.mubr.f32.gmra.mxu0 %v116
    %v230 = vpop.f32.mrf.mxu0
    %v231 = vadd.f32 0.0, %v230
    %v232 = vpop.f32.mrf.mxu0
    %233 = vmatprep.mubr.f32.mxu0 0.0
    %234 = vmatmul.mubr.f32.gmra.mxu0 %v117
    %v235 = vpop.f32.mrf.mxu0
    %v236 = vadd.f32 0.0, %v235
    %v237 = vpop.f32.mrf.mxu0
    %238 = vmatprep.mubr.f32.mxu0 0.0
    %239 = vmatmul.mubr.f32.gmra.mxu0 %v118
    %v240 = vpop.f32.mrf.mxu0
    %v241 = vadd.f32 0.0, %v240
    %v242 = vpop.f32.mrf.mxu0
    %243 = vmatprep.mubr.f32.mxu0 0.0
    %244 = vmatmul.mubr.f32.gmra.mxu0 %v119
    %v245 = vpop.f32.mrf.mxu0
    %v246 = vadd.f32 0.0, %v245
    %v247 = vpop.f32.mrf.mxu0
    %248 = vmatprep.mubr.f32.mxu0 0.0
    %249 = vmatmul.mubr.f32.gmra.mxu0 %v120
    %v250 = vpop.f32.mrf.mxu0
    %v251 = vadd.f32 0.0, %v250
    %v252 = vpop.f32.mrf.mxu0
    %253 = vmatprep.mubr.f32.mxu0 0.0
    %254 = vmatmul.mubr.f32.gmra.mxu0 %v121
    %v255 = vpop.f32.mrf.mxu0
    %v256 = vadd.f32 0.0, %v255
    %v257 = vpop.f32.mrf.mxu0
    %258 = vmatprep.mubr.f32.mxu0 0.0
    %259 = vmatmul.mubr.f32.gmra.mxu0 %v122
    %v260 = vpop.f32.mrf.mxu0
    %v261 = vadd.f32 0.0, %v260
    %v262 = vpop.f32.mrf.mxu0
    %263 = vmatprep.mubr.f32.mxu0 0.0
    %264 = vmatmul.mubr.f32.gmra.mxu0 %v123
    %v265 = vpop.f32.mrf.mxu0
    %v266 = vadd.f32 0.0, %v265
    %v267 = vpop.f32.mrf.mxu0
    %268 = vmatprep.mubr.f32.mxu0 0.0
    %269 = vmatmul.mubr.f32.gmra.mxu0 %v124
    %v270 = vpop.f32.mrf.mxu0
    %v271 = vadd.f32 0.0, %v270
    %v272 = vpop.f32.mrf.mxu0
    %273 = vmatprep.mubr.f32.mxu0 0.0
    %274 = vmatmul.mubr.f32.gmra.mxu0 %v125
    %v275 = vpop.f32.mrf.mxu0
    %v276 = vadd.f32 0.0, %v275
    %v277 = vpop.f32.mrf.mxu0
    %278 = vmatprep.mubr.f32.mxu0 0.0
    %279 = vmatmul.mubr.f32.gmra.mxu0 %v126
    %v280 = vpop.f32.mrf.mxu0
    %v281 = vadd.f32 0.0, %v280
    %v282 = vpop.f32.mrf.mxu0
    %283 = vmatprep.mubr.f32.mxu0 0.0
    %284 = vmatmul.mubr.f32.gmra.mxu0 %v127
    %v285 = vpop.f32.mrf.mxu0
    %v286 = vadd.f32 0.0, %v285
    %v287 = vpop.f32.mrf.mxu0
    %288 = vdwg.mxu0
    %v289 = vadd.f32 %v96, %v211
    %v290 = vadd.f32 %v97, %v216
    %v291 = vadd.f32 %v98, %v221
    %v292 = vadd.f32 %v99, %v226
    %v293 = vadd.f32 %v100, %v231
    %v294 = vadd.f32 %v101, %v236
    %v295 = vadd.f32 %v102, %v241
    %v296 = vadd.f32 %v103, %v246
    %v297 = vadd.f32 %v104, %v251
    %v298 = vadd.f32 %v105, %v256
    %v299 = vadd.f32 %v106, %v261
    %v300 = vadd.f32 %v107, %v266
    %v301 = vadd.f32 %v108, %v271
    %v302 = vadd.f32 %v109, %v276
    %v303 = vadd.f32 %v110, %v281
    %v304 = vadd.f32 %v111, %v286
    %305 = vst [vmem:[#allocation2] sm:$0xff] %v289
    %306 = vst [vmem:[#allocation2 + $0x8] sm:$0xff] %v290
    %307 = vst [vmem:[#allocation2 + $0x10] sm:$0xff] %v291
    %308 = vst [vmem:[#allocation2 + $0x18] sm:$0xff] %v292
    %309 = vst [vmem:[#allocation2 + $0x20] sm:$0xff] %v293
    %310 = vst [vmem:[#allocation2 + $0x28] sm:$0xff] %v294
    %311 = vst [vmem:[#allocation2 + $0x30] sm:$0xff] %v295
    %312 = vst [vmem:[#allocation2 + $0x38] sm:$0xff] %v296
    %313 = vst [vmem:[#allocation2 + $0x40] sm:$0xff] %v297
    %314 = vst [vmem:[#allocation2 + $0x48] sm:$0xff] %v298
    %315 = vst [vmem:[#allocation2 + $0x50] sm:$0xff] %v299
    %316 = vst [vmem:[#allocation2 + $0x58] sm:$0xff] %v300
    %317 = vst [vmem:[#allocation2 + $0x60] sm:$0xff] %v301
    %318 = vst [vmem:[#allocation2 + $0x68] sm:$0xff] %v302
    %319 = vst [vmem:[#allocation2 + $0x70] sm:$0xff] %v303
    %320 = vst [vmem:[#allocation2 + $0x78] sm:$0xff] %v304
    // Predicated region
    $region42: #{tpu_custom_call.1} parent=1 // pred_check
      %p321 = pneg %p76
    $region43: #{tpu_custom_call.1} parent=1 // pred_check_branch
      %323 = sbr.rel (%p321) target = $region45
    $region44: #{tpu_custom_call.1} parent=1 // pred_region
      %v324 = vld [vmem:[#allocation8] sm:$0xff]
      %v325 = vld [vmem:[#allocation8 + $0x8] sm:$0xff]
      %v326 = vld [vmem:[#allocation8 + $0x10] sm:$0xff]
      %v327 = vld [vmem:[#allocation8 + $0x18] sm:$0xff]
      %v328 = vld [vmem:[#allocation8 + $0x20] sm:$0xff]
      %v329 = vld [vmem:[#allocation8 + $0x28] sm:$0xff]
      %v330 = vld [vmem:[#allocation8 + $0x30] sm:$0xff]
      %v331 = vld [vmem:[#allocation8 + $0x38] sm:$0xff]
      %v332 = vld [vmem:[#allocation8 + $0x40] sm:$0xff]
      %v333 = vld [vmem:[#allocation8 + $0x48] sm:$0xff]
      %v334 = vld [vmem:[#allocation8 + $0x50] sm:$0xff]
      %v335 = vld [vmem:[#allocation8 + $0x58] sm:$0xff]
      %v336 = vld [vmem:[#allocation8 + $0x60] sm:$0xff]
      %v337 = vld [vmem:[#allocation8 + $0x68] sm:$0xff]
      %v338 = vld [vmem:[#allocation8 + $0x70] sm:$0xff]
      %v339 = vld [vmem:[#allocation8 + $0x78] sm:$0xff]
      %v340 = vld [vmem:[#allocation2] sm:$0xff]
      %v341 = vld [vmem:[#allocation2 + $0x8] sm:$0xff]
      %v342 = vld [vmem:[#allocation2 + $0x10] sm:$0xff]
      %v343 = vld [vmem:[#allocation2 + $0x18] sm:$0xff]
      %v344 = vld [vmem:[#allocation2 + $0x20] sm:$0xff]
      %v345 = vld [vmem:[#allocation2 + $0x28] sm:$0xff]
      %v346 = vld [vmem:[#allocation2 + $0x30] sm:$0xff]
      %v347 = vld [vmem:[#allocation2 + $0x38] sm:$0xff]
      %v348 = vld [vmem:[#allocation2 + $0x40] sm:$0xff]
      %v349 = vld [vmem:[#allocation2 + $0x48] sm:$0xff]
      %v350 = vld [vmem:[#allocation2 + $0x50] sm:$0xff]
      %v351 = vld [vmem:[#allocation2 + $0x58] sm:$0xff]
      %v352 = vld [vmem:[#allocation2 + $0x60] sm:$0xff]
      %v353 = vld [vmem:[#allocation2 + $0x68] sm:$0xff]
      %v354 = vld [vmem:[#allocation2 + $0x70] sm:$0xff]
      %v355 = vld [vmem:[#allocation2 + $0x78] sm:$0xff]
      %v356 = vld [vmem:[#allocation9] sm:$0xff]
      %v357 = vld [vmem:[#allocation9 + $0x8] sm:$0xff]
      %v358 = vld [vmem:[#allocation9 + $0x10] sm:$0xff]
      %v359 = vld [vmem:[#allocation9 + $0x18] sm:$0xff]
      %v360 = vld [vmem:[#allocation9 + $0x20] sm:$0xff]
      %v361 = vld [vmem:[#allocation9 + $0x28] sm:$0xff]
      %v362 = vld [vmem:[#allocation9 + $0x30] sm:$0xff]
      %v363 = vld [vmem:[#allocation9 + $0x38] sm:$0xff]
      %v364 = vld [vmem:[#allocation9 + $0x40] sm:$0xff]
      %v365 = vld [vmem:[#allocation9 + $0x48] sm:$0xff]
      %v366 = vld [vmem:[#allocation9 + $0x50] sm:$0xff]
      %v367 = vld [vmem:[#allocation9 + $0x58] sm:$0xff]
      %v368 = vld [vmem:[#allocation9 + $0x60] sm:$0xff]
      %v369 = vld [vmem:[#allocation9 + $0x68] sm:$0xff]
      %v370 = vld [vmem:[#allocation9 + $0x70] sm:$0xff]
      %v371 = vld [vmem:[#allocation9 + $0x78] sm:$0xff]
      %v372 = vld [vmem:[#allocation9 + $0x80] sm:$0xff]
      %v373 = vld [vmem:[#allocation9 + $0x88] sm:$0xff]
      %v374 = vld [vmem:[#allocation9 + $0x90] sm:$0xff]
      %v375 = vld [vmem:[#allocation9 + $0x98] sm:$0xff]
      %v376 = vld [vmem:[#allocation9 + $0xa0] sm:$0xff]
      %v377 = vld [vmem:[#allocation9 + $0xa8] sm:$0xff]
      %v378 = vld [vmem:[#allocation9 + $0xb0] sm:$0xff]
      %v379 = vld [vmem:[#allocation9 + $0xb8] sm:$0xff]
      %v380 = vld [vmem:[#allocation9 + $0xc0] sm:$0xff]
      %v381 = vld [vmem:[#allocation9 + $0xc8] sm:$0xff]
      %v382 = vld [vmem:[#allocation9 + $0xd0] sm:$0xff]
      %v383 = vld [vmem:[#allocation9 + $0xd8] sm:$0xff]
      %v384 = vld [vmem:[#allocation9 + $0xe0] sm:$0xff]
      %v385 = vld [vmem:[#allocation9 + $0xe8] sm:$0xff]
      %v386 = vld [vmem:[#allocation9 + $0xf0] sm:$0xff]
      %v387 = vld [vmem:[#allocation9 + $0xf8] sm:$0xff]
      %v388 = vld [vmem:[%s4] sm:$0x1]
      %v390 = vlaneseq
      %v391 = vshrl.u32 %v390, 7
      %v392 = vsub.s32 0, %v391
      %v393 = vrot.slane %v388, %v392
      %395 = vmatprep.subr.mxu0 0.0
      %396 = vmatpush1.msra.mxu0 %v371
      %397 = vmatprep.subr.mxu0 0.0
      %398 = vmatpush1.msra.mxu0 %v370
      %399 = vmatprep.subr.mxu0 0.0
      %400 = vmatpush1.msra.mxu0 %v369
      %401 = vmatprep.subr.mxu0 0.0
      %402 = vmatpush1.msra.mxu0 %v368
      %403 = vmatprep.subr.mxu0 0.0
      %404 = vmatpush1.msra.mxu0 %v367
      %405 = vmatprep.subr.mxu0 0.0
      %406 = vmatpush1.msra.mxu0 %v366
      %407 = vmatprep.subr.mxu0 0.0
      %408 = vmatpush1.msra.mxu0 %v365
      %409 = vmatprep.subr.mxu0 0.0
      %410 = vmatpush1.msra.mxu0 %v364
      %411 = vmatprep.subr.mxu0 0.0
      %412 = vmatpush1.msra.mxu0 %v363
      %413 = vmatprep.subr.mxu0 0.0
      %414 = vmatpush1.msra.mxu0 %v362
      %415 = vmatprep.subr.mxu0 0.0
      %416 = vmatpush1.msra.mxu0 %v361
      %417 = vmatprep.subr.mxu0 0.0
      %418 = vmatpush1.msra.mxu0 %v360
      %419 = vmatprep.subr.mxu0 0.0
      %420 = vmatpush1.msra.mxu0 %v359
      %421 = vmatprep.subr.mxu0 0.0
      %422 = vmatpush1.msra.mxu0 %v358
      %423 = vmatprep.subr.mxu0 0.0
      %424 = vmatpush1.msra.mxu0 %v357
      %425 = vmatprep.subr.mxu0 0.0
      %426 = vmatpush1.msra.mxu0 %v356
      %427 = vmatprep.subr.mxu0 0.0
      %428 = vmatpush2.msra.mxu0 %v387
      %429 = vmatprep.subr.mxu0 0.0
      %430 = vmatpush2.msra.mxu0 %v386
      %431 = vmatprep.subr.mxu0 0.0
      %432 = vmatpush2.msra.mxu0 %v385
      %433 = vmatprep.subr.mxu0 0.0
      %434 = vmatpush2.msra.mxu0 %v384
      %435 = vmatprep.subr.mxu0 0.0
      %436 = vmatpush2.msra.mxu0 %v383
      %437 = vmatprep.subr.mxu0 0.0
      %438 = vmatpush2.msra.mxu0 %v382
      %439 = vmatprep.subr.mxu0 0.0
      %440 = vmatpush2.msra.mxu0 %v381
      %441 = vmatprep.subr.mxu0 0.0
      %442 = vmatpush2.msra.mxu0 %v380
      %443 = vmatprep.subr.mxu0 0.0
      %444 = vmatpush2.msra.mxu0 %v379
      %445 = vmatprep.subr.mxu0 0.0
      %446 = vmatpush2.msra.mxu0 %v378
      %447 = vmatprep.subr.mxu0 0.0
      %448 = vmatpush2.msra.mxu0 %v377
      %449 = vmatprep.subr.mxu0 0.0
      %450 = vmatpush2.msra.mxu0 %v376
      %451 = vmatprep.subr.mxu0 0.0
      %452 = vmatpush2.msra.mxu0 %v375
      %453 = vmatprep.subr.mxu0 0.0
      %454 = vmatpush2.msra.mxu0 %v374
      %455 = vmatprep.subr.mxu0 0.0
      %456 = vmatpush2.msra.mxu0 %v373
      %457 = vmatprep.subr.mxu0 0.0
      %458 = vmatpush2.msra.mxu0 %v372
      %459 = vmatprep.mubr.f32.mxu0 %v340
      %460 = vmatmul.mubr.f32.gmra.mxu0 %v324
      %v461 = vpop.f32.mrf.mxu0
      %v462 = vadd.f32 %v393, %v461
      %v463 = vpop.f32.mrf.mxu0
      %464 = vmatprep.mubr.f32.mxu0 %v341
      %465 = vmatmul.mubr.f32.gmra.mxu0 %v325
      %v466 = vpop.f32.mrf.mxu0
      %v467 = vadd.f32 %v393, %v466
      %v468 = vpop.f32.mrf.mxu0
      %469 = vmatprep.mubr.f32.mxu0 %v342
      %470 = vmatmul.mubr.f32.gmra.mxu0 %v326
      %v471 = vpop.f32.mrf.mxu0
      %v472 = vadd.f32 %v393, %v471
      %v473 = vpop.f32.mrf.mxu0
      %474 = vmatprep.mubr.f32.mxu0 %v343
      %475 = vmatmul.mubr.f32.gmra.mxu0 %v327
      %v476 = vpop.f32.mrf.mxu0
      %v477 = vadd.f32 %v393, %v476
      %v478 = vpop.f32.mrf.mxu0
      %479 = vmatprep.mubr.f32.mxu0 %v344
      %480 = vmatmul.mubr.f32.gmra.mxu0 %v328
      %v481 = vpop.f32.mrf.mxu0
      %v482 = vadd.f32 %v393, %v481
      %v483 = vpop.f32.mrf.mxu0
      %484 = vmatprep.mubr.f32.mxu0 %v345
      %485 = vmatmul.mubr.f32.gmra.mxu0 %v329
      %v486 = vpop.f32.mrf.mxu0
      %v487 = vadd.f32 %v393, %v486
      %v488 = vpop.f32.mrf.mxu0
      %489 = vmatprep.mubr.f32.mxu0 %v346
      %490 = vmatmul.mubr.f32.gmra.mxu0 %v330
      %v491 = vpop.f32.mrf.mxu0
      %v492 = vadd.f32 %v393, %v491
      %v493 = vpop.f32.mrf.mxu0
      %494 = vmatprep.mubr.f32.mxu0 %v347
      %495 = vmatmul.mubr.f32.gmra.mxu0 %v331
      %v496 = vpop.f32.mrf.mxu0
      %v497 = vadd.f32 %v393, %v496
      %v498 = vpop.f32.mrf.mxu0
      %499 = vmatprep.mubr.f32.mxu0 %v348
      %500 = vmatmul.mubr.f32.gmra.mxu0 %v332
      %v501 = vpop.f32.mrf.mxu0
      %v502 = vadd.f32 %v393, %v501
      %v503 = vpop.f32.mrf.mxu0
      %504 = vmatprep.mubr.f32.mxu0 %v349
      %505 = vmatmul.mubr.f32.gmra.mxu0 %v333
      %v506 = vpop.f32.mrf.mxu0
      %v507 = vadd.f32 %v393, %v506
      %v508 = vpop.f32.mrf.mxu0
      %509 = vmatprep.mubr.f32.mxu0 %v350
      %510 = vmatmul.mubr.f32.gmra.mxu0 %v334
      %v511 = vpop.f32.mrf.mxu0
      %v512 = vadd.f32 %v393, %v511
      %v513 = vpop.f32.mrf.mxu0
      %514 = vmatprep.mubr.f32.mxu0 %v351
      %515 = vmatmul.mubr.f32.gmra.mxu0 %v335
      %v516 = vpop.f32.mrf.mxu0
      %v517 = vadd.f32 %v393, %v516
      %v518 = vpop.f32.mrf.mxu0
      %519 = vmatprep.mubr.f32.mxu0 %v352
      %520 = vmatmul.mubr.f32.gmra.mxu0 %v336
      %v521 = vpop.f32.mrf.mxu0
      %v522 = vadd.f32 %v393, %v521
      %v523 = vpop.f32.mrf.mxu0
      %524 = vmatprep.mubr.f32.mxu0 %v353
      %525 = vmatmul.mubr.f32.gmra.mxu0 %v337
      %v526 = vpop.f32.mrf.mxu0
      %v527 = vadd.f32 %v393, %v526
      %v528 = vpop.f32.mrf.mxu0
      %529 = vmatprep.mubr.f32.mxu0 %v354
      %530 = vmatmul.mubr.f32.gmra.mxu0 %v338
      %v531 = vpop.f32.mrf.mxu0
      %v532 = vadd.f32 %v393, %v531
      %v533 = vpop.f32.mrf.mxu0
      %534 = vmatprep.mubr.f32.mxu0 %v355
      %535 = vmatmul.mubr.f32.gmra.mxu0 %v339
      %v536 = vpop.f32.mrf.mxu0
      %v537 = vadd.f32 %v393, %v536
      %v538 = vpop.f32.mrf.mxu0
      %539 = vdwg.mxu0
      %v540 = vmax.f32 %v462, 0.0
      %v541 = vmax.f32 %v467, 0.0
      %v542 = vmax.f32 %v472, 0.0
      %v543 = vmax.f32 %v477, 0.0
      %v544 = vmax.f32 %v482, 0.0
      %v545 = vmax.f32 %v487, 0.0
      %v546 = vmax.f32 %v492, 0.0
      %v547 = vmax.f32 %v497, 0.0
      %v548 = vmax.f32 %v502, 0.0
      %v549 = vmax.f32 %v507, 0.0
      %v550 = vmax.f32 %v512, 0.0
      %v551 = vmax.f32 %v517, 0.0
      %v552 = vmax.f32 %v522, 0.0
      %v553 = vmax.f32 %v527, 0.0
      %v554 = vmax.f32 %v532, 0.0
      %v555 = vmax.f32 %v537, 0.0
      %556 = vst [vmem:[#allocation11] sm:$0xff] %v540
      %557 = vst [vmem:[#allocation11 + $0x8] sm:$0xff] %v541
      %558 = vst [vmem:[#allocation11 + $0x10] sm:$0xff] %v542
      %559 = vst [vmem:[#allocation11 + $0x18] sm:$0xff] %v543
      %560 = vst [vmem:[#allocation11 + $0x20] sm:$0xff] %v544
      %561 = vst [vmem:[#allocation11 + $0x28] sm:$0xff] %v545
      %562 = vst [vmem:[#allocation11 + $0x30] sm:$0xff] %v546
      %563 = vst [vmem:[#allocation11 + $0x38] sm:$0xff] %v547
      %564 = vst [vmem:[#allocation11 + $0x40] sm:$0xff] %v548
      %565 = vst [vmem:[#allocation11 + $0x48] sm:$0xff] %v549
      %566 = vst [vmem:[#allocation11 + $0x50] sm:$0xff] %v550
      %567 = vst [vmem:[#allocation11 + $0x58] sm:$0xff] %v551
      %568 = vst [vmem:[#allocation11 + $0x60] sm:$0xff] %v552
      %569 = vst [vmem:[#allocation11 + $0x68] sm:$0xff] %v553
      %570 = vst [vmem:[#allocation11 + $0x70] sm:$0xff] %v554
      %571 = vst [vmem:[#allocation11 + $0x78] sm:$0xff] %v555
    $region45: #{tpu_custom_call.1} parent=1 // pred_fallthru
      _
    // Predicated region
    $region46: #{tpu_custom_call.1} parent=1 // pred_check
      _
    $region47: #{tpu_custom_call.1} parent=1 // pred_check_branch
      %573 = sbr.rel (0) target = $region49
    $region48: #{tpu_custom_call.1} parent=1 // pred_region
      %s575 = ssub.s32 2048, 2048
      %576 = vsyncadd [#allocation5], %s575
      %s577 = sshll.u32 [#allocation11], 4
      %s578 = int_to_ptr.vmem [resolvable:$true] %s577
      %583 = dma.vmem_to_hbm [thread:$0]  %s578, 2048, %s5, [#allocation5], 128, 128, 8
    $region49: #{tpu_custom_call.1} parent=1 // pred_fallthru
      _
    // Predicated region
    $region50: #{tpu_custom_call.1} parent=1 // pred_check
      _
    $region51: #{tpu_custom_call.1} parent=1 // pred_check_branch
      %585 = sbr.rel (0) target = $region53
    $region52: #{tpu_custom_call.1} parent=1 // pred_region
      %586 = dma.done [#allocation5], 2048
    $region53: #{tpu_custom_call.1} parent=1 // pred_fallthru
      _
    %587 = vsyncpa [#allocation4], 1
    %588 = vsyncpa [#allocation7], 1
    %589 = vsyncpa [#allocation10], 1
    %590 = vsyncpa [#allocation5], 1

</llo_original>
